<compile_context>
chip_gen: v5e
topology: v5e:2x2
jax: 0.10.0
libtpu: 0.0.40
codegen_flags: <defaults>
</compile_context>

<pallas_src>
import functools

import jax
import jax.numpy as jnp
from jax.experimental import pallas as pl
from jax.experimental.pallas import tpu as pltpu


def _round_up(x: int, m: int) -> int:
    return ((x + m - 1) // m) * m


def kernel_dense_kernel(x_ref, cols_ref, rows_ref, alpha_ref, bias_ref, o_ref, w_ref):
    # w slab is independent of x: compute once per out-tile (batch is the inner
    # grid axis), fold alpha in as a per-input-row scale, cache in VMEM scratch.
    @pl.when(pl.program_id(1) == 0)
    def _():
        cols = cols_ref[...]                                     # (kp, dim)
        rows_t = rows_ref[...]                                   # (dim, tn)
        c2 = jnp.sum(cols * cols, axis=1, keepdims=True)         # (kp, 1)
        r2 = jnp.sum(rows_t * rows_t, axis=0, keepdims=True)     # (1, tn)
        xy = jnp.dot(cols, rows_t,
                     preferred_element_type=jnp.float32)         # (kp, tn)
        w = jnp.exp(-(c2 + r2 - 2.0 * xy)) * alpha_ref[...]      # alpha folded in
        w_ref[...] = w.astype(w_ref.dtype)

    y = jnp.dot(x_ref[...].astype(w_ref.dtype), w_ref[...],
                preferred_element_type=jnp.float32)              # (tm, tn) on MXU
    o_ref[...] = (y + bias_ref[...]).astype(o_ref.dtype)


@functools.partial(jax.jit, static_argnames=("compute_dtype",))
def kernel_dense_forward(x, columns, rows, alpha, bias, *, compute_dtype=jnp.float32):
    batch, in_features = x.shape
    out_features, dim = rows.shape

    # ---- tile sizes: lane-dense output tiles (multiple of 128) ----------------
    tm = 256 if batch >= 256 else _round_up(batch, 8)
    tn = min(_round_up(out_features, 128), 512)

    bp = _round_up(batch, tm)            # padded batch
    op = _round_up(out_features, tn)     # padded out_features
    kp = _round_up(in_features, 8)       # padded in_features (zero pads are neutral)
    # TODO(synk): for very large in_features add an innermost K grid axis with an
    # f32 accumulator instead of keeping the full (kp, tn) w slab resident.

    # ---- pad inputs to tile boundaries (zeros are neutral: x/alpha pads = 0) --
    xp = jnp.zeros((bp, kp), x.dtype).at[:batch, :in_features].set(x)
    cols_p = jnp.zeros((kp, dim), columns.dtype).at[:in_features, :].set(columns)
    rows_t = jnp.zeros((dim, op), rows.dtype).at[:, :out_features].set(rows.T)
    alpha_c = jnp.zeros((kp, 1), alpha.dtype).at[:in_features, 0].set(alpha)
    bias_r = jnp.zeros((1, op), bias.dtype).at[0, :out_features].set(bias)

    grid = (op // tn, bp // tm)          # (out tiles [parallel], batch tiles [inner])

    # ---- VMEM budget: double-buffered ins/outs + cached w slab ---------------
    def _lp(r, c):                       # layout-padded f32 bytes of an (r, c) buffer
        return _round_up(r, 8) * _round_up(c, 128) * 4

    est = (2 * (_lp(tm, kp) + _lp(kp, dim) + _lp(dim, tn)
                + _lp(kp, 1) + _lp(1, tn) + _lp(tm, tn))
           + _lp(kp, tn))
    vmem_limit = int(max(2 * est + (4 << 20), 32 << 20))

    cost = pl.CostEstimate(
        flops=2 * bp * kp * op + 2 * kp * op * dim,
        transcendentals=kp * op,
        bytes_accessed=4 * (bp * kp + kp * dim + dim * op + kp + op + bp * op),
    )

    out_padded = pl.pallas_call(
        kernel_dense_kernel,
        out_shape=jax.ShapeDtypeStruct((bp, op), jnp.float32),
        grid_spec=pltpu.PrefetchScalarGridSpec(
            num_scalar_prefetch=0,
            grid=grid,
            in_specs=[
                pl.BlockSpec((tm, kp), lambda j, b: (b, 0)),    # x         (batch tile)
                pl.BlockSpec((kp, dim), lambda j, b: (0, 0)),   # columns   (whole)
                pl.BlockSpec((dim, tn), lambda j, b: (0, j)),   # rows^T    (out tile)
                pl.BlockSpec((kp, 1), lambda j, b: (0, 0)),     # alpha col (whole)
                pl.BlockSpec((1, tn), lambda j, b: (0, j)),     # bias row  (out tile)
            ],
            out_specs=pl.BlockSpec((tm, tn), lambda j, b: (b, j)),
            scratch_shapes=[pltpu.VMEM((kp, tn), compute_dtype)],  # cached w slab
        ),
        compiler_params=pltpu.CompilerParams(
            dimension_semantics=("parallel", "arbitrary"),
            vmem_limit_bytes=vmem_limit,
        ),
        cost_estimate=cost,
    )(xp, cols_p, rows_t, alpha_c, bias_r)

    return out_padded[:batch, :out_features]


def reference_forward(x, columns, rows, alpha, bias):
    x2 = jnp.sum(rows ** 2, axis=1)[None, :]
    y2 = jnp.sum(columns ** 2, axis=1)[:, None]
    xy = -2.0 * (columns @ rows.T)
    w = jnp.exp(-(x2 + y2 + xy))
    return (x * alpha[None, :]) @ w + bias[None, :]


def _make_inputs(key, batch, in_features, out_features, dim):
    k1, k2, k3, k4, k5 = jax.random.split(key, 5)
    # reset_parameters(): rows/columns/alpha ~ N(0,1), bias ~ N(0, 1e-5)
    columns = jax.random.normal(k1, (in_features, dim), dtype=jnp.float32)
    rows = jax.random.normal(k2, (out_features, dim), dtype=jnp.float32)
    alpha = jax.random.normal(k3, (in_features,), dtype=jnp.float32)
    bias = 1e-5 * jax.random.normal(k4, (out_features,), dtype=jnp.float32)
    x = jax.random.normal(k5, (batch, in_features), dtype=jnp.float32)
    return x, columns, rows, alpha, bias


if __name__ == "__main__":
    key = jax.random.PRNGKey(0)

    # Small shape matching the original module defaults.
    x, columns, rows, alpha, bias = _make_inputs(key, batch=8, in_features=32,
                                                 out_features=32, dim=2)
    y = jax.block_until_ready(kernel_dense_forward(x, columns, rows, alpha, bias))
    y_ref = reference_forward(x, columns, rows, alpha, bias)
    assert jnp.allclose(y, y_ref, atol=1e-4, rtol=1e-4), "mismatch vs reference (small)"

    # Larger, non-aligned shape to exercise multi-tile grid, padding and w caching.
    key2 = jax.random.PRNGKey(1)
    x2, c2, r2, a2, b2 = _make_inputs(key2, batch=300, in_features=200,
                                      out_features=300, dim=2)
    y2 = jax.block_until_ready(kernel_dense_forward(x2, c2, r2, a2, b2))
    y2_ref = reference_forward(x2, c2, r2, a2, b2)
    assert jnp.allclose(y2, y2_ref, atol=1e-3, rtol=1e-3), "mismatch vs reference (tiled)"

    print("KERNEL_OK")
</pallas_src>

<mosaic_0001>
module attributes {stable_mosaic.version = 11 : i64} {
  func.func @kernel_dense_kernel(%arg0: i32, %arg1: i32, %arg2: memref<8x32xf32, #tpu.memory_space<vmem>>, %arg3: memref<32x2xf32, #tpu.memory_space<vmem>>, %arg4: memref<2x128xf32, #tpu.memory_space<vmem>>, %arg5: memref<32x1xf32, #tpu.memory_space<vmem>>, %arg6: memref<1x128xf32, #tpu.memory_space<vmem>>, %arg7: memref<8x128xf32, #tpu.memory_space<vmem>>, %arg8: memref<32x128xf32, #tpu.memory_space<vmem>>) attributes {dimension_semantics = [#tpu.dimension_semantics<parallel>, #tpu.dimension_semantics<arbitrary>], iteration_bounds = array<i64: 1, 1>, scalar_prefetch = 0 : i64, scratch_operands = 1 : i64, tpu.core_type = #tpu.core_type<tc>, window_params = [{transform_indices = @transform_0, window_bounds = array<i64: 8, 32>}, {pipeline_mode = #tpu.pipeline_mode<synchronous>, transform_indices = @transform_1, window_bounds = array<i64: 32, 2>}, {transform_indices = @transform_2, window_bounds = array<i64: 2, 128>}, {pipeline_mode = #tpu.pipeline_mode<synchronous>, transform_indices = @transform_3, window_bounds = array<i64: 32, 1>}, {transform_indices = @transform_4, window_bounds = array<i64: 1, 128>}, {transform_indices = @transform_5, window_bounds = array<i64: 8, 128>}]} {
    %c0_i32 = arith.constant 0 : i32
    %0 = arith.cmpi eq, %arg1, %c0_i32 : i32
    %1 = arith.extui %0 : i1 to i32
    %c0_i32_0 = arith.constant 0 : i32
    %2 = arith.cmpi ne, %1, %c0_i32_0 : i32
    scf.if %2 {
      %c0_8 = arith.constant 0 : index
      %c0_9 = arith.constant 0 : index
      %10 = vector.load %arg3[%c0_8, %c0_9] : memref<32x2xf32, #tpu.memory_space<vmem>>, vector<32x2xf32>
      %c0_10 = arith.constant 0 : index
      %c0_11 = arith.constant 0 : index
      %11 = vector.load %arg4[%c0_10, %c0_11] : memref<2x128xf32, #tpu.memory_space<vmem>>, vector<2x128xf32>
      %12 = arith.mulf %10, %10 : vector<32x2xf32>
      %cst_12 = arith.constant dense<0.000000e+00> : vector<32xf32>
      %13 = vector.multi_reduction <add>, %12, %cst_12 [1] : vector<32x2xf32> to vector<32xf32>
      %14 = vector.shape_cast %13 : vector<32xf32> to vector<32x1xf32>
      %15 = arith.mulf %11, %11 : vector<2x128xf32>
      %cst_13 = arith.constant dense<0.000000e+00> : vector<128xf32>
      %16 = vector.multi_reduction <add>, %15, %cst_13 [0] : vector<2x128xf32> to vector<128xf32>
      %17 = vector.shape_cast %16 : vector<128xf32> to vector<1x128xf32>
      %cst_14 = arith.constant dense<0.000000e+00> : vector<32x128xf32>
      %18 = tpu.matmul %10, %11, %cst_14 {dimension_numbers = #tpu.dot_dimension_numbers<[1], [0], [0], [1], [0, 0, 1, 1], [], []>} : vector<32x2xf32>, vector<2x128xf32>, vector<32x128xf32> -> vector<32x128xf32>
      %19 = vector.broadcast %14 : vector<32x1xf32> to vector<32x128xf32>
      %20 = vector.broadcast %17 : vector<1x128xf32> to vector<32x128xf32>
      %21 = arith.addf %19, %20 : vector<32x128xf32>
      %cst_15 = arith.constant 2.000000e+00 : f32
      %22 = vector.broadcast %cst_15 : f32 to vector<32x128xf32>
      %23 = arith.mulf %22, %18 : vector<32x128xf32>
      %24 = arith.subf %21, %23 : vector<32x128xf32>
      %cst_16 = arith.constant 0.000000e+00 : f32
      %25 = vector.broadcast %cst_16 : f32 to vector<32x128xf32>
      %26 = arith.subf %25, %24 : vector<32x128xf32>
      %27 = math.exp %26 : vector<32x128xf32>
      %c0_17 = arith.constant 0 : index
      %c0_18 = arith.constant 0 : index
      %28 = vector.load %arg5[%c0_17, %c0_18] : memref<32x1xf32, #tpu.memory_space<vmem>>, vector<32x1xf32>
      %29 = vector.broadcast %28 : vector<32x1xf32> to vector<32x128xf32>
      %30 = arith.mulf %27, %29 : vector<32x128xf32>
      %c0_19 = arith.constant 0 : index
      %c0_20 = arith.constant 0 : index
      %31 = vector.load %arg8[%c0_19, %c0_20] : memref<32x128xf32, #tpu.memory_space<vmem>>, vector<32x128xf32>
      tpu.vector_store %arg8[%c0_19, %c0_20], %30 {strides = array<i32>} : memref<32x128xf32, #tpu.memory_space<vmem>>, vector<32x128xf32>,
    } else {
    }
    %c0 = arith.constant 0 : index
    %c0_1 = arith.constant 0 : index
    %3 = vector.load %arg2[%c0, %c0_1] : memref<8x32xf32, #tpu.memory_space<vmem>>, vector<8x32xf32>
    %c0_2 = arith.constant 0 : index
    %c0_3 = arith.constant 0 : index
    %4 = vector.load %arg8[%c0_2, %c0_3] : memref<32x128xf32, #tpu.memory_space<vmem>>, vector<32x128xf32>
    %cst = arith.constant dense<0.000000e+00> : vector<8x128xf32>
    %5 = tpu.matmul %3, %4, %cst {dimension_numbers = #tpu.dot_dimension_numbers<[1], [0], [0], [1], [0, 0, 1, 1], [], []>} : vector<8x32xf32>, vector<32x128xf32>, vector<8x128xf32> -> vector<8x128xf32>
    %c0_4 = arith.constant 0 : index
    %c0_5 = arith.constant 0 : index
    %6 = vector.load %arg6[%c0_4, %c0_5] : memref<1x128xf32, #tpu.memory_space<vmem>>, vector<1x128xf32>
    %7 = vector.broadcast %6 : vector<1x128xf32> to vector<8x128xf32>
    %8 = arith.addf %5, %7 : vector<8x128xf32>
    %c0_6 = arith.constant 0 : index
    %c0_7 = arith.constant 0 : index
    %9 = vector.load %arg7[%c0_6, %c0_7] : memref<8x128xf32, #tpu.memory_space<vmem>>, vector<8x128xf32>
    tpu.vector_store %arg7[%c0_6, %c0_7], %8 {strides = array<i32>} : memref<8x128xf32, #tpu.memory_space<vmem>>, vector<8x128xf32>,
    return
  }
  func.func @transform_0(%arg0: i32, %arg1: i32) -> (i32, i32) {
    %c0_i32 = arith.constant 0 : i32
    %c0_i32_0 = arith.constant 0 : i32
    return %arg1, %c0_i32 : i32, i32
  }
  func.func @transform_1(%arg0: i32, %arg1: i32) -> (i32, i32) {
    %c0_i32 = arith.constant 0 : i32
    %c0_i32_0 = arith.constant 0 : i32
    %c0_i32_1 = arith.constant 0 : i32
    return %c0_i32, %c0_i32_0 : i32, i32
  }
  func.func @transform_2(%arg0: i32, %arg1: i32) -> (i32, i32) {
    %c0_i32 = arith.constant 0 : i32
    %c0_i32_0 = arith.constant 0 : i32
    return %c0_i32, %arg0 : i32, i32
  }
  func.func @transform_3(%arg0: i32, %arg1: i32) -> (i32, i32) {
    %c0_i32 = arith.constant 0 : i32
    %c0_i32_0 = arith.constant 0 : i32
    %c0_i32_1 = arith.constant 0 : i32
    return %c0_i32, %c0_i32_0 : i32, i32
  }
  func.func @transform_4(%arg0: i32, %arg1: i32) -> (i32, i32) {
    %c0_i32 = arith.constant 0 : i32
    %c0_i32_0 = arith.constant 0 : i32
    return %c0_i32, %arg0 : i32, i32
  }
  func.func @transform_5(%arg0: i32, %arg1: i32) -> (i32, i32) {
    %c0_i32 = arith.constant 0 : i32
    return %arg1, %arg0 : i32, i32
  }
}

</mosaic_0001>

<llo_original>
// kernel: kernel_dense_forward.1
$region0: #{kernel_dense_forward.1}
  #allocation0 [shape = 'u32[]', space=smem, size = 0x4, offset = 0x4, fixed_abs, tag = 'smem constant byte address 0x4 - core index']
  #allocation1 [shape = 'u32[72,128]{1,0:T(1,128)}', space=vmem, size = 0x9000, scoped, tag = 'internal scratch']
  #allocation2 [shape = 'f32[32,128]{1,0:T(8,128)}', space=vmem, size = 0x4000, scoped, tag = 'scratch operand']
  %s0 = inlined_call_operand.vmem [shape: f32[8,32], index: 0, kind: input, shape index: {}]
  %s1 = inlined_call_operand.vmem [shape: f32[32,2], index: 1, kind: input, shape index: {}]
  %s2 = inlined_call_operand.vmem [shape: f32[2,128], index: 2, kind: input, shape index: {}]
  %s3 = inlined_call_operand.vmem [shape: f32[32,1], index: 3, kind: input, shape index: {}]
  %s4 = inlined_call_operand.vmem [shape: f32[1,128], index: 4, kind: input, shape index: {}]
  %s5 = inlined_call_operand.hbm [shape: f32[8,128], index: 5, kind: output, shape index: {}]
  %s6 = sld [smem:[#allocation0]]
  $region34: #{kernel_dense_forward.1} parent=0
    _
  %s8 = ssub.s32 1, %s6
  %s9 = scalar_select 0, %s8, %s6
  $region1: #{kernel_dense_forward.1} parent=0
    #allocation3 [shape = 'u8[4096]{0}', space=vmem, size = 0x1000, scoped, tag = 'output window, operand 0, single buffered']
    #allocation4 [shape = 's32[1]{0}', space=sflag, size = 0x4, scoped, tag = 'scoped memory for kernel_dense_forward.1']
    %10 = vsyncpa [#allocation4], 0
    // Predicated region
    $region2: #{kernel_dense_forward.1} parent=1 // pred_check
      _
    $region3: #{kernel_dense_forward.1} parent=1 // pred_check_branch
      %12 = sbr.rel (0) target = $region5
    $region4: #{kernel_dense_forward.1} parent=1 // pred_region
      _
    $region5: #{kernel_dense_forward.1} parent=1 // pred_fallthru
      _
    // Predicated region
    $region6: #{kernel_dense_forward.1} parent=1 // pred_check
      _
    $region7: #{kernel_dense_forward.1} parent=1 // pred_check_branch
      %14 = sbr.rel (0) target = $region9
    $region8: #{kernel_dense_forward.1} parent=1 // pred_region
      _
    $region9: #{kernel_dense_forward.1} parent=1 // pred_fallthru
      _
    // Predicated region
    $region10: #{kernel_dense_forward.1} parent=1 // pred_check
      _
    $region11: #{kernel_dense_forward.1} parent=1 // pred_check_branch
      %16 = sbr.rel (0) target = $region13
    $region12: #{kernel_dense_forward.1} parent=1 // pred_region
      _
    $region13: #{kernel_dense_forward.1} parent=1 // pred_fallthru
      _
    // Predicated region
    $region14: #{kernel_dense_forward.1} parent=1 // pred_check
      _
    $region15: #{kernel_dense_forward.1} parent=1 // pred_check_branch
      %18 = sbr.rel (0) target = $region17
    $region16: #{kernel_dense_forward.1} parent=1 // pred_region
      _
    $region17: #{kernel_dense_forward.1} parent=1 // pred_fallthru
      _
    // Predicated region
    $region18: #{kernel_dense_forward.1} parent=1 // pred_check
      _
    $region19: #{kernel_dense_forward.1} parent=1 // pred_check_branch
      %20 = sbr.rel (0) target = $region21
    $region20: #{kernel_dense_forward.1} parent=1 // pred_region
      _
    $region21: #{kernel_dense_forward.1} parent=1 // pred_fallthru
      _
    %p21 = scmp.eq.s32.totalorder 0, 0
    // Predicated region
    $region22: #{kernel_dense_forward.1} parent=1 // pred_check
      %p22 = pneg %p21
    $region23: #{kernel_dense_forward.1} parent=1 // pred_check_branch
      %24 = sbr.rel (%p22) target = $region25
    $region24: #{kernel_dense_forward.1} parent=1 // pred_region
      %v25 = vld [vmem:[%s1] sm:$0xff]
      %v26 = vld [vmem:[%s1 + $0x8] sm:$0xff]
      %v27 = vld [vmem:[%s1 + $0x10] sm:$0xff]
      %v28 = vld [vmem:[%s1 + $0x18] sm:$0xff]
      %v29 = vld [vmem:[%s2] sm:$0x3]
      %v30 = vmul.f32 %v25, %v25
      %v31 = vmul.f32 %v26, %v26
      %v32 = vmul.f32 %v27, %v27
      %v33 = vmul.f32 %v28, %v28
      %vm34 = vcmask 15360
      %v35 = vsel %vm34, %v30, 0.0
      %36 = vadd.xlane.f32.xlu0 %v35
      %v37 = vpop.xlane.xlu0 %36
      %v38 = vsel %vm34, %v31, 0.0
      %39 = vadd.xlane.f32.xlu0 %v38
      %v40 = vpop.xlane.xlu0 %39
      %v41 = vsel %vm34, %v32, 0.0
      %42 = vadd.xlane.f32.xlu0 %v41
      %v43 = vpop.xlane.xlu0 %42
      %v44 = vsel %vm34, %v33, 0.0
      %45 = vadd.xlane.f32.xlu0 %v44
      %v46 = vpop.xlane.xlu0 %45
      %v47 = vmul.f32 %v29, %v29
      %vm48 = vcmask 1041408
      %v49 = vsel %vm48, %v47, 0.0
      %v50 = vrot.slane %v49, 4
      %v51 = vadd.f32 %v49, %v50
      %v52 = vrot.slane %v51, 2
      %v53 = vadd.f32 %v51, %v52
      %v54 = vrot.slane %v53, 1
      %v55 = vadd.f32 %v53, %v54
      %v57 = vsel %vm34, %v25, 0
      %v60 = vsel %vm34, %v26, 0
      %v63 = vsel %vm34, %v27, 0
      %v66 = vsel %vm34, %v28, 0
      %v69 = vsel %vm48, %v29, 0
      %71 = vmatpush.msra.mxu0 0.0
      %72 = vmatpush.msra.mxu0 0.0
      %73 = vmatpush.msra.mxu0 0.0
      %74 = vmatpush.msra.mxu0 0.0
      %75 = vmatpush.msra.mxu0 0.0
      %76 = vmatpush.msra.mxu0 0.0
      %77 = vmatpush.msra.mxu0 0.0
      %78 = vmatpush.msra.mxu0 0.0
      %79 = vmatpush.msra.mxu0 0.0
      %80 = vmatpush.msra.mxu0 0.0
      %81 = vmatpush.msra.mxu0 0.0
      %82 = vmatpush.msra.mxu0 0.0
      %83 = vmatpush.msra.mxu0 0.0
      %84 = vmatpush.msra.mxu0 0.0
      %85 = vmatpush.msra.mxu0 0.0
      %86 = vmatpush.msra.mxu0 %v69
      %87 = vmatmul.f32.gmra.mxu0 %v57
      %v88 = vpop.f32.mrf.mxu0
      %v89 = vadd.f32 0.0, %v88
      %90 = vmatmul.f32.gmra.mxu0 %v60
      %v91 = vpop.f32.mrf.mxu0
      %v92 = vadd.f32 0.0, %v91
      %93 = vmatmul.f32.gmra.mxu0 %v63
      %v94 = vpop.f32.mrf.mxu0
      %v95 = vadd.f32 0.0, %v94
      %96 = vmatmul.f32.gmra.mxu0 %v66
      %v97 = vpop.f32.mrf.mxu0
      %v98 = vadd.f32 0.0, %v97
      %99 = vdwg.mxu0
      %v100 = vadd.f32 %v37, %v55
      %v101 = vadd.f32 %v40, %v55
      %v102 = vadd.f32 %v43, %v55
      %v103 = vadd.f32 %v46, %v55
      %v104 = vmul.f32 %v89, 2.0
      %v105 = vmul.f32 %v92, 2.0
      %v106 = vmul.f32 %v95, 2.0
      %v107 = vmul.f32 %v98, 2.0
      %v108 = vsub.f32 %v100, %v104
      %v109 = vsub.f32 %v101, %v105
      %v110 = vsub.f32 %v102, %v106
      %v111 = vsub.f32 %v103, %v107
      %v112 = vsub.f32 0.0, %v108
      %v113 = vsub.f32 0.0, %v109
      %v114 = vsub.f32 0.0, %v110
      %v115 = vsub.f32 0.0, %v111
      %v116 = vmul.f32 %v112, 1.442695
      %v117 = vpow.pop %v116
      %v118 = vmul.f32 %v113, 1.442695
      %v119 = vpow.pop %v118
      %v120 = vmul.f32 %v114, 1.442695
      %v121 = vpow.pop %v120
      %v122 = vmul.f32 %v115, 1.442695
      %v123 = vpow.pop %v122
      %v124 = vld [vmem:[%s3] sm:$0xff]
      %v125 = vld [vmem:[%s3 + $0x8] sm:$0xff]
      %v126 = vld [vmem:[%s3 + $0x10] sm:$0xff]
      %v127 = vld [vmem:[%s3 + $0x18] sm:$0xff]
      %129 = vset.pattern.permute.xlu0 0
      %130 = vperm.xlu0 %129, %v124
      %v131 = vpop.permute.xlu0 %130
      %134 = vset.pattern.permute.xlu0 0
      %135 = vperm.xlu0 %134, %v125
      %v136 = vpop.permute.xlu0 %135
      %139 = vset.pattern.permute.xlu0 0
      %140 = vperm.xlu0 %139, %v126
      %v141 = vpop.permute.xlu0 %140
      %144 = vset.pattern.permute.xlu0 0
      %145 = vperm.xlu0 %144, %v127
      %v146 = vpop.permute.xlu0 %145
      %v148 = vmul.f32 %v117, %v131
      %v149 = vmul.f32 %v119, %v136
      %v150 = vmul.f32 %v121, %v141
      %v151 = vmul.f32 %v123, %v146
      %152 = vst [vmem:[#allocation2] sm:$0xff] %v148
      %153 = vst [vmem:[#allocation2 + $0x8] sm:$0xff] %v149
      %154 = vst [vmem:[#allocation2 + $0x10] sm:$0xff] %v150
      %155 = vst [vmem:[#allocation2 + $0x18] sm:$0xff] %v151
    $region25: #{kernel_dense_forward.1} parent=1 // pred_fallthru
      _
    %v156 = vld [vmem:[%s0] sm:$0xff]
    %v157 = vld [vmem:[#allocation2] sm:$0xff]
    %v158 = vld [vmem:[#allocation2 + $0x8] sm:$0xff]
    %v159 = vld [vmem:[#allocation2 + $0x10] sm:$0xff]
    %v160 = vld [vmem:[#allocation2 + $0x18] sm:$0xff]
    %v161 = vld [vmem:[%s4] sm:$0x1]
    %v163 = vperm.slane %v161, 0
    %vm165 = vcmask 261120
    %v167 = vsel %vm165, %v156, 0
    %169 = vmatpush.msra.mxu0 0.0
    %170 = vmatpush.msra.mxu0 0.0
    %171 = vmatpush.msra.mxu0 0.0
    %172 = vmatpush.msra.mxu0 0.0
    %173 = vmatpush.msra.mxu0 0.0
    %174 = vmatpush.msra.mxu0 0.0
    %175 = vmatpush.msra.mxu0 0.0
    %176 = vmatpush.msra.mxu0 0.0
    %177 = vmatpush.msra.mxu0 0.0
    %178 = vmatpush.msra.mxu0 0.0
    %179 = vmatpush.msra.mxu0 0.0
    %180 = vmatpush.msra.mxu0 0.0
    %181 = vmatpush.msra.mxu0 %v160
    %182 = vmatpush.msra.mxu0 %v159
    %183 = vmatpush.msra.mxu0 %v158
    %184 = vmatpush.msra.mxu0 %v157
    %185 = vmatmul.f32.gmra.mxu0 %v167
    %v186 = vpop.f32.mrf.mxu0
    %v187 = vadd.f32 %v163, %v186
    %188 = vdwg.mxu0
    %189 = vst [vmem:[#allocation3] sm:$0xff] %v187
    // Predicated region
    $region26: #{kernel_dense_forward.1} parent=1 // pred_check
      _
    $region27: #{kernel_dense_forward.1} parent=1 // pred_check_branch
      %191 = sbr.rel (0) target = $region29
    $region28: #{kernel_dense_forward.1} parent=1 // pred_region
      %193 = vsyncadd [#allocation4], 0
      %s195 = sshll.u32 [#allocation3], 4
      %s196 = int_to_ptr.vmem [resolvable:$true] %s195
      %s197 = sshll.u32 %s5, 4
      %s198 = int_to_ptr.hbm [resolvable:$true] %s197
      %200 = dma.vmem_to_hbm [thread:$0]  %s196, 128, %s198, [#allocation4]
    $region29: #{kernel_dense_forward.1} parent=1 // pred_fallthru
      _
    // Predicated region
    $region30: #{kernel_dense_forward.1} parent=1 // pred_check
      _
    $region31: #{kernel_dense_forward.1} parent=1 // pred_check_branch
      %202 = sbr.rel (0) target = $region33
    $region32: #{kernel_dense_forward.1} parent=1 // pred_region
      %204 = dma.done [#allocation4], 128
    $region33: #{kernel_dense_forward.1} parent=1 // pred_fallthru
      _
    %205 = vsyncpa [#allocation4], 1

</llo_original>
